<compile_context>
chip_gen: v7x
topology: tpu7x:2x2x1
jax: 0.10.0
libtpu: 0.0.40
codegen_flags: <defaults>
</compile_context>

<pallas_src>
import functools

import jax
import jax.numpy as jnp
from jax.experimental import pallas as pl
from jax.experimental.pallas import tpu as pltpu

LN_EPS = 1e-5
LEAKY_SLOPE = 0.01


def _leaky_relu(h):
    return jnp.where(h > 0, h, LEAKY_SLOPE * h)


def _layernorm(h, gamma, beta):
    # Two-pass (mean, centered variance) form: matches PyTorch nn.LayerNorm and is
    # more numerically stable than E[h^2] - mu^2 (kept per review's correctness note).
    mu = jnp.mean(h, axis=-1, keepdims=True)
    d = h - mu
    var = jnp.mean(d * d, axis=-1, keepdims=True)
    return d * jax.lax.rsqrt(var + LN_EPS) * gamma + beta


def _mlp_kernel(x_ref, w1_ref, w2_ref, w3_ref, vec_ref, b3_ref, o_ref, *, compute_dtype):
    # x arrives in its HBM dtype (f32); cast to the MXU operand dtype in-kernel so the
    # wrapper never does an extra pad/cast HBM pass over x.
    x = x_ref[...].astype(compute_dtype)

    b1, g1, be1 = vec_ref[0:1, :], vec_ref[1:2, :], vec_ref[2:3, :]
    b2, g2, be2 = vec_ref[3:4, :], vec_ref[4:5, :], vec_ref[5:6, :]

    # Layer 1: Linear -> LayerNorm -> LeakyReLU (compute_dtype operands, f32 accumulate).
    h = jnp.dot(x, w1_ref[...], preferred_element_type=jnp.float32) + b1
    h = _leaky_relu(_layernorm(h, g1, be1))

    # Layer 2
    h = jnp.dot(h.astype(compute_dtype), w2_ref[...],
                preferred_element_type=jnp.float32) + b2
    h = _leaky_relu(_layernorm(h, g2, be2))

    # Layer 3: Linear
    y = jnp.dot(h.astype(compute_dtype), w3_ref[...],
                preferred_element_type=jnp.float32) + b3_ref[...]
    # TODO(synk): optionally emit bf16 output to halve writeback bytes (contract change).
    o_ref[...] = y.astype(o_ref.dtype)


def _tpu_vmem_capacity_bytes():
    try:
        return int(pltpu.get_tpu_info().vmem_capacity_bytes)
    except Exception:
        return 64 * 1024 * 1024  # conservative fallback: v7x per-TensorCore VMEM


def _choose_batch_tile(B, inp_dim, hidden_dim, out_dim, weight_bytes, budget, min_tile):
    def fits(t):
        io = 2 * t * (inp_dim + out_dim) * 4        # double-buffered x / out (f32 in HBM)
        scratch = 6 * t * hidden_dim * 4            # intermediate-activation headroom
        return weight_bytes + io + scratch <= budget

    # Small batch: a single grid step (each step costs ~0.35 us fixed overhead; a
    # single-TC chip gains nothing from splitting a tiny batch).
    # TODO(synk): on v7x dual-TC parts prefer >=2 (even) steps once per-step work > ~1 us.
    if B <= 1024 and fits(B):
        return B
    for t in (2048, 1024, 512, 256, 128, 64, 32, 16, 8):
        if min_tile <= t <= B and fits(t):
            return t
    return min(B, min_tile)


def gru_hidden_state_forward(x, params, *, batch_tile=None,
                             compute_dtype=jnp.bfloat16,
                             core_parallel=False,
                             x_buffer_count=2):
    """Fused MLP forward. x: (B, inp_dim) float32. Returns (B, out_dim) float32.

    compute_dtype: MXU operand dtype (bf16 default; accumulation / LayerNorm /
    LeakyReLU stay f32).  Use jnp.float32 for exact PyTorch-parity numerics.
    core_parallel: emit pltpu.CORE_PARALLEL on the batch grid axis (v7x dual-TC).
    """
    (w1, b1, g1, be1, w2, b2, g2, be2, w3, b3) = params
    B, inp_dim = x.shape
    hidden_dim = w1.shape[1]
    out_dim = w3.shape[1]

    # Weights in MXU operand dtype (halves resident weight VMEM when bf16); the small
    # bias/gamma/beta vectors stay f32 and are stacked into one VMEM-resident array.
    w1c = w1.astype(compute_dtype)
    w2c = w2.astype(compute_dtype)
    w3c = w3.astype(compute_dtype)
    vec = jnp.stack([jnp.reshape(v, (hidden_dim,)).astype(jnp.float32)
                     for v in (b1, g1, be1, b2, g2, be2)], axis=0)        # (6, hidden)
    b3f = jnp.reshape(b3, (1, out_dim)).astype(jnp.float32)

    w_itemsize = jnp.dtype(compute_dtype).itemsize
    weight_bytes = (w1c.size + w2c.size + w3c.size) * w_itemsize + (vec.size + b3f.size) * 4

    vmem_cap = _tpu_vmem_capacity_bytes()
    budget = int(vmem_cap * 0.70)           # tile-selection budget (scales with generation)
    min_tile = 8 if w_itemsize >= 4 else 16  # bf16 packs 16 rows per sublane group
    if batch_tile is None:
        batch_tile = _choose_batch_tile(B, inp_dim, hidden_dim, out_dim,
                                        weight_bytes, budget, min_tile)
    batch_tile = min(batch_tile, B)
    assert batch_tile == B or batch_tile % 8 == 0, \
        "batch_tile must be a multiple of 8 (or cover the whole batch)"

    grid = (pl.cdiv(B, batch_tile),)        # ragged last block: reads padded, writes masked

    x_spec = pl.BlockSpec((batch_tile, inp_dim), lambda i: (i, 0))
    if x_buffer_count != 2:
        # Optional deeper pipelining if profiling shows exposed x DMA at large tiles.
        x_spec = pl.BlockSpec((batch_tile, inp_dim), lambda i: (i, 0),
                              pipeline_mode=pl.Buffered(x_buffer_count))
    vmem_resident = pl.BlockSpec(memory_space=pltpu.MemorySpace.VMEM)
    in_specs = [x_spec] + [vmem_resident] * 5
    out_specs = pl.BlockSpec((batch_tile, out_dim), lambda i: (i, 0))

    # Always set the scoped-VMEM limit (v5e's default is only 16 MiB); keep headroom
    # below physical capacity (matters on v7x where physical VMEM is 64 MiB per TC).
    vmem_est = (weight_bytes
                + 2 * batch_tile * (inp_dim + out_dim) * 4
                + 6 * batch_tile * hidden_dim * 4)
    vmem_limit = int(min(max(vmem_est * 5 // 4 + (4 << 20), 32 << 20),
                         int(vmem_cap * 0.82)))

    dim_sem = (pltpu.CORE_PARALLEL,) if core_parallel else ("parallel",)

    cost = pl.CostEstimate(
        flops=2 * B * (inp_dim * hidden_dim + hidden_dim * hidden_dim + hidden_dim * out_dim),
        transcendentals=2 * B,  # one rsqrt per row per LayerNorm
        bytes_accessed=int(x.nbytes) + int(weight_bytes) + B * out_dim * 4,
    )

    kernel = functools.partial(_mlp_kernel, compute_dtype=compute_dtype)

    # TODO(synk): for very large hidden_dim (>=2048), add a K-reduction grid axis
    # ("arbitrary") with a VMEM f32 accumulator instead of whole-weight residency.
    out = pl.pallas_call(
        kernel,
        out_shape=jax.ShapeDtypeStruct((B, out_dim), jnp.float32),
        grid_spec=pltpu.PrefetchScalarGridSpec(
            num_scalar_prefetch=0,
            grid=grid,
            in_specs=in_specs,
            out_specs=out_specs,
        ),
        compiler_params=pltpu.CompilerParams(
            dimension_semantics=dim_sem,
            vmem_limit_bytes=vmem_limit,
        ),
        cost_estimate=cost,
    )(x, w1c, w2c, w3c, vec, b3f)

    return out


# ----------------------------- reference & init -----------------------------

def reference_forward(x, params):
    (w1, b1, g1, be1, w2, b2, g2, be2, w3, b3) = params
    h = x @ w1 + b1
    h = _leaky_relu(_layernorm(h, g1, be1))
    h = h @ w2 + b2
    h = _leaky_relu(_layernorm(h, g2, be2))
    return h @ w3 + b3


def init_params(key, inp_dim, hidden_dim, out_dim):
    ks = jax.random.split(key, 6)
    s1 = 1.0 / jnp.sqrt(inp_dim)
    s2 = 1.0 / jnp.sqrt(hidden_dim)
    w1 = jax.random.uniform(ks[0], (inp_dim, hidden_dim), jnp.float32, -s1, s1)
    b1 = jax.random.uniform(ks[1], (hidden_dim,), jnp.float32, -s1, s1)
    g1 = jnp.ones((hidden_dim,), jnp.float32)
    be1 = jnp.zeros((hidden_dim,), jnp.float32)
    w2 = jax.random.uniform(ks[2], (hidden_dim, hidden_dim), jnp.float32, -s2, s2)
    b2 = jax.random.uniform(ks[3], (hidden_dim,), jnp.float32, -s2, s2)
    g2 = jnp.ones((hidden_dim,), jnp.float32)
    be2 = jnp.zeros((hidden_dim,), jnp.float32)
    w3 = jax.random.uniform(ks[4], (hidden_dim, out_dim), jnp.float32, -s2, s2)
    b3 = jax.random.uniform(ks[5], (out_dim,), jnp.float32, -s2, s2)
    return (w1, b1, g1, be1, w2, b2, g2, be2, w3, b3)


if __name__ == "__main__":
    key = jax.random.PRNGKey(0)
    k_x, k_p = jax.random.split(key)

    batch, inp_dim, hidden_dim, out_dim = 64, 16, 32, 16
    x = jax.random.normal(k_x, (batch, inp_dim), jnp.float32)
    params = init_params(k_p, inp_dim, hidden_dim, out_dim)

    ref = reference_forward(x, params)

    # f32 path: exact PyTorch semantics; small batch -> single grid step.
    out_f32 = gru_hidden_state_forward(x, params, compute_dtype=jnp.float32)
    out_f32 = jax.block_until_ready(out_f32)
    assert out_f32.shape == (batch, out_dim)
    assert jnp.allclose(out_f32, ref, atol=3e-5, rtol=3e-5), "f32 kernel mismatch vs reference"

    # Default bf16-MXU path, forced multi-step grid to exercise the batch pipeline.
    out_bf16 = gru_hidden_state_forward(x, params, batch_tile=32)
    out_bf16 = jax.block_until_ready(out_bf16)
    assert out_bf16.shape == (batch, out_dim)
    assert float(jnp.max(jnp.abs(out_bf16 - ref))) < 0.2, "bf16 kernel deviates too far"

    print("KERNEL_OK")
</pallas_src>

<mosaic_0001>
module attributes {stable_mosaic.version = 11 : i64} {
  func.func @_mlp_kernel(%arg0: i32, %arg1: memref<64x16xf32, #tpu.memory_space<vmem>>, %arg2: memref<16x32xf32, #tpu.memory_space<vmem>>, %arg3: memref<32x32xf32, #tpu.memory_space<vmem>>, %arg4: memref<32x16xf32, #tpu.memory_space<vmem>>, %arg5: memref<6x32xf32, #tpu.memory_space<vmem>>, %arg6: memref<1x16xf32, #tpu.memory_space<vmem>>, %arg7: memref<64x16xf32, #tpu.memory_space<vmem>>) attributes {dimension_semantics = [#tpu.dimension_semantics<parallel>], iteration_bounds = array<i64: 1>, scalar_prefetch = 0 : i64, scratch_operands = 0 : i64, tpu.core_type = #tpu.core_type<tc>, window_params = [{transform_indices = @transform_0, window_bounds = array<i64: 64, 16>}, {pipeline_mode = #tpu.pipeline_mode<synchronous>, transform_indices = @transform_1, window_bounds = array<i64: 16, 32>}, {pipeline_mode = #tpu.pipeline_mode<synchronous>, transform_indices = @transform_2, window_bounds = array<i64: 32, 32>}, {pipeline_mode = #tpu.pipeline_mode<synchronous>, transform_indices = @transform_3, window_bounds = array<i64: 32, 16>}, {pipeline_mode = #tpu.pipeline_mode<synchronous>, transform_indices = @transform_4, window_bounds = array<i64: 6, 32>}, {pipeline_mode = #tpu.pipeline_mode<synchronous>, transform_indices = @transform_5, window_bounds = array<i64: 1, 16>}, {transform_indices = @transform_6, window_bounds = array<i64: 64, 16>}]} {
    %c0 = arith.constant 0 : index
    %c0_0 = arith.constant 0 : index
    %0 = vector.load %arg1[%c0, %c0_0] : memref<64x16xf32, #tpu.memory_space<vmem>>, vector<64x16xf32>
    %c0_1 = arith.constant 0 : index
    %c0_2 = arith.constant 0 : index
    %1 = vector.load %arg5[%c0_1, %c0_2] : memref<6x32xf32, #tpu.memory_space<vmem>>, vector<1x32xf32>
    %c1 = arith.constant 1 : index
    %c0_3 = arith.constant 0 : index
    %2 = vector.load %arg5[%c1, %c0_3] : memref<6x32xf32, #tpu.memory_space<vmem>>, vector<1x32xf32>
    %c2 = arith.constant 2 : index
    %c0_4 = arith.constant 0 : index
    %3 = vector.load %arg5[%c2, %c0_4] : memref<6x32xf32, #tpu.memory_space<vmem>>, vector<1x32xf32>
    %c3 = arith.constant 3 : index
    %c0_5 = arith.constant 0 : index
    %4 = vector.load %arg5[%c3, %c0_5] : memref<6x32xf32, #tpu.memory_space<vmem>>, vector<1x32xf32>
    %c4 = arith.constant 4 : index
    %c0_6 = arith.constant 0 : index
    %5 = vector.load %arg5[%c4, %c0_6] : memref<6x32xf32, #tpu.memory_space<vmem>>, vector<1x32xf32>
    %c5 = arith.constant 5 : index
    %c0_7 = arith.constant 0 : index
    %6 = vector.load %arg5[%c5, %c0_7] : memref<6x32xf32, #tpu.memory_space<vmem>>, vector<1x32xf32>
    %c0_8 = arith.constant 0 : index
    %c0_9 = arith.constant 0 : index
    %7 = vector.load %arg2[%c0_8, %c0_9] : memref<16x32xf32, #tpu.memory_space<vmem>>, vector<16x32xf32>
    %cst = arith.constant dense<0.000000e+00> : vector<64x32xf32>
    %8 = tpu.matmul %0, %7, %cst {dimension_numbers = #tpu.dot_dimension_numbers<[1], [0], [0], [1], [0, 0, 1, 1], [], []>} : vector<64x16xf32>, vector<16x32xf32>, vector<64x32xf32> -> vector<64x32xf32>
    %9 = vector.broadcast %1 : vector<1x32xf32> to vector<64x32xf32>
    %10 = arith.addf %8, %9 : vector<64x32xf32>
    %cst_10 = arith.constant dense<0.000000e+00> : vector<64xf32>
    %11 = vector.multi_reduction <add>, %10, %cst_10 [1] : vector<64x32xf32> to vector<64xf32>
    %12 = vector.shape_cast %11 : vector<64xf32> to vector<64x1xf32>
    %cst_11 = arith.constant 3.200000e+01 : f32
    %13 = vector.broadcast %cst_11 : f32 to vector<64x1xf32>
    %14 = arith.divf %12, %13 : vector<64x1xf32>
    %15 = vector.broadcast %14 : vector<64x1xf32> to vector<64x32xf32>
    %16 = arith.subf %10, %15 : vector<64x32xf32>
    %17 = arith.mulf %16, %16 : vector<64x32xf32>
    %cst_12 = arith.constant dense<0.000000e+00> : vector<64xf32>
    %18 = vector.multi_reduction <add>, %17, %cst_12 [1] : vector<64x32xf32> to vector<64xf32>
    %19 = vector.shape_cast %18 : vector<64xf32> to vector<64x1xf32>
    %cst_13 = arith.constant 3.200000e+01 : f32
    %20 = vector.broadcast %cst_13 : f32 to vector<64x1xf32>
    %21 = arith.divf %19, %20 : vector<64x1xf32>
    %cst_14 = arith.constant 9.99999974E-6 : f32
    %22 = vector.broadcast %cst_14 : f32 to vector<64x1xf32>
    %23 = arith.addf %21, %22 : vector<64x1xf32>
    %24 = math.rsqrt %23 : vector<64x1xf32>
    %25 = vector.broadcast %24 : vector<64x1xf32> to vector<64x32xf32>
    %26 = arith.mulf %16, %25 : vector<64x32xf32>
    %27 = vector.broadcast %2 : vector<1x32xf32> to vector<64x32xf32>
    %28 = arith.mulf %26, %27 : vector<64x32xf32>
    %29 = vector.broadcast %3 : vector<1x32xf32> to vector<64x32xf32>
    %30 = arith.addf %28, %29 : vector<64x32xf32>
    %cst_15 = arith.constant 0.000000e+00 : f32
    %31 = vector.broadcast %cst_15 : f32 to vector<64x32xf32>
    %32 = arith.cmpf ogt, %30, %31 : vector<64x32xf32>
    %cst_16 = arith.constant 0.00999999977 : f32
    %33 = vector.broadcast %cst_16 : f32 to vector<64x32xf32>
    %34 = arith.mulf %33, %30 : vector<64x32xf32>
    %35 = arith.select %32, %30, %34 : vector<64x32xi1>, vector<64x32xf32>
    %c0_17 = arith.constant 0 : index
    %c0_18 = arith.constant 0 : index
    %36 = vector.load %arg3[%c0_17, %c0_18] : memref<32x32xf32, #tpu.memory_space<vmem>>, vector<32x32xf32>
    %cst_19 = arith.constant dense<0.000000e+00> : vector<64x32xf32>
    %37 = tpu.matmul %35, %36, %cst_19 {dimension_numbers = #tpu.dot_dimension_numbers<[1], [0], [0], [1], [0, 0, 1, 1], [], []>} : vector<64x32xf32>, vector<32x32xf32>, vector<64x32xf32> -> vector<64x32xf32>
    %38 = vector.broadcast %4 : vector<1x32xf32> to vector<64x32xf32>
    %39 = arith.addf %37, %38 : vector<64x32xf32>
    %cst_20 = arith.constant dense<0.000000e+00> : vector<64xf32>
    %40 = vector.multi_reduction <add>, %39, %cst_20 [1] : vector<64x32xf32> to vector<64xf32>
    %41 = vector.shape_cast %40 : vector<64xf32> to vector<64x1xf32>
    %cst_21 = arith.constant 3.200000e+01 : f32
    %42 = vector.broadcast %cst_21 : f32 to vector<64x1xf32>
    %43 = arith.divf %41, %42 : vector<64x1xf32>
    %44 = vector.broadcast %43 : vector<64x1xf32> to vector<64x32xf32>
    %45 = arith.subf %39, %44 : vector<64x32xf32>
    %46 = arith.mulf %45, %45 : vector<64x32xf32>
    %cst_22 = arith.constant dense<0.000000e+00> : vector<64xf32>
    %47 = vector.multi_reduction <add>, %46, %cst_22 [1] : vector<64x32xf32> to vector<64xf32>
    %48 = vector.shape_cast %47 : vector<64xf32> to vector<64x1xf32>
    %cst_23 = arith.constant 3.200000e+01 : f32
    %49 = vector.broadcast %cst_23 : f32 to vector<64x1xf32>
    %50 = arith.divf %48, %49 : vector<64x1xf32>
    %cst_24 = arith.constant 9.99999974E-6 : f32
    %51 = vector.broadcast %cst_24 : f32 to vector<64x1xf32>
    %52 = arith.addf %50, %51 : vector<64x1xf32>
    %53 = math.rsqrt %52 : vector<64x1xf32>
    %54 = vector.broadcast %53 : vector<64x1xf32> to vector<64x32xf32>
    %55 = arith.mulf %45, %54 : vector<64x32xf32>
    %56 = vector.broadcast %5 : vector<1x32xf32> to vector<64x32xf32>
    %57 = arith.mulf %55, %56 : vector<64x32xf32>
    %58 = vector.broadcast %6 : vector<1x32xf32> to vector<64x32xf32>
    %59 = arith.addf %57, %58 : vector<64x32xf32>
    %cst_25 = arith.constant 0.000000e+00 : f32
    %60 = vector.broadcast %cst_25 : f32 to vector<64x32xf32>
    %61 = arith.cmpf ogt, %59, %60 : vector<64x32xf32>
    %cst_26 = arith.constant 0.00999999977 : f32
    %62 = vector.broadcast %cst_26 : f32 to vector<64x32xf32>
    %63 = arith.mulf %62, %59 : vector<64x32xf32>
    %64 = arith.select %61, %59, %63 : vector<64x32xi1>, vector<64x32xf32>
    %c0_27 = arith.constant 0 : index
    %c0_28 = arith.constant 0 : index
    %65 = vector.load %arg4[%c0_27, %c0_28] : memref<32x16xf32, #tpu.memory_space<vmem>>, vector<32x16xf32>
    %cst_29 = arith.constant dense<0.000000e+00> : vector<64x16xf32>
    %66 = tpu.matmul %64, %65, %cst_29 {dimension_numbers = #tpu.dot_dimension_numbers<[1], [0], [0], [1], [0, 0, 1, 1], [], []>} : vector<64x32xf32>, vector<32x16xf32>, vector<64x16xf32> -> vector<64x16xf32>
    %c0_30 = arith.constant 0 : index
    %c0_31 = arith.constant 0 : index
    %67 = vector.load %arg6[%c0_30, %c0_31] : memref<1x16xf32, #tpu.memory_space<vmem>>, vector<1x16xf32>
    %68 = vector.broadcast %67 : vector<1x16xf32> to vector<64x16xf32>
    %69 = arith.addf %66, %68 : vector<64x16xf32>
    %c0_32 = arith.constant 0 : index
    %c0_33 = arith.constant 0 : index
    %70 = vector.load %arg7[%c0_32, %c0_33] : memref<64x16xf32, #tpu.memory_space<vmem>>, vector<64x16xf32>
    tpu.vector_store %arg7[%c0_32, %c0_33], %69 {strides = array<i32>} : memref<64x16xf32, #tpu.memory_space<vmem>>, vector<64x16xf32>,
    return
  }
  func.func @transform_0(%arg0: i32) -> (i32, i32) {
    %c0_i32 = arith.constant 0 : i32
    %c0_i32_0 = arith.constant 0 : i32
    return %arg0, %c0_i32 : i32, i32
  }
  func.func @transform_1(%arg0: i32) -> (i32, i32) {
    %c0_i32 = arith.constant 0 : i32
    %c0_i32_0 = arith.constant 0 : i32
    %c0_i32_1 = arith.constant 0 : i32
    return %c0_i32, %c0_i32_0 : i32, i32
  }
  func.func @transform_2(%arg0: i32) -> (i32, i32) {
    %c0_i32 = arith.constant 0 : i32
    %c0_i32_0 = arith.constant 0 : i32
    %c0_i32_1 = arith.constant 0 : i32
    return %c0_i32, %c0_i32_0 : i32, i32
  }
  func.func @transform_3(%arg0: i32) -> (i32, i32) {
    %c0_i32 = arith.constant 0 : i32
    %c0_i32_0 = arith.constant 0 : i32
    %c0_i32_1 = arith.constant 0 : i32
    return %c0_i32, %c0_i32_0 : i32, i32
  }
  func.func @transform_4(%arg0: i32) -> (i32, i32) {
    %c0_i32 = arith.constant 0 : i32
    %c0_i32_0 = arith.constant 0 : i32
    %c0_i32_1 = arith.constant 0 : i32
    return %c0_i32, %c0_i32_0 : i32, i32
  }
  func.func @transform_5(%arg0: i32) -> (i32, i32) {
    %c0_i32 = arith.constant 0 : i32
    %c0_i32_0 = arith.constant 0 : i32
    %c0_i32_1 = arith.constant 0 : i32
    return %c0_i32, %c0_i32_0 : i32, i32
  }
  func.func @transform_6(%arg0: i32) -> (i32, i32) {
    %c0_i32 = arith.constant 0 : i32
    %c0_i32_0 = arith.constant 0 : i32
    return %arg0, %c0_i32 : i32, i32
  }
}

</mosaic_0001>

<llo_original>
// kernel: tpu_custom_call.1
$region0: #{tpu_custom_call.1}
  #allocation0 [shape = 'u32[]', space=smem, size = 0x4, offset = 0x4, fixed_abs, tag = 'smem constant byte address 0x4 - core index']
  #allocation1 [shape = 'u32[144,128]{1,0:T(1,128)}', space=vmem, size = 0x12000, scoped, tag = 'internal scratch']
  %s0 = inlined_call_operand.vmem [shape: f32[64,16], index: 0, kind: input, shape index: {}]
  %s1 = inlined_call_operand.vmem [shape: f32[16,32], index: 1, kind: input, shape index: {}]
  %s2 = inlined_call_operand.vmem [shape: f32[32,32], index: 2, kind: input, shape index: {}]
  %s3 = inlined_call_operand.vmem [shape: f32[32,16], index: 3, kind: input, shape index: {}]
  %s4 = inlined_call_operand.vmem [shape: f32[6,32], index: 4, kind: input, shape index: {}]
  %s5 = inlined_call_operand.vmem [shape: f32[1,16], index: 5, kind: input, shape index: {}]
  %s6 = inlined_call_operand.vmem [shape: f32[64,16], index: 6, kind: output, shape index: {}]
  %s7 = sld [smem:[#allocation0]]
  $region34: #{tpu_custom_call.1} parent=0
    _
  %s9 = ssub.s32 1, %s7
  %s10 = scalar_select 0, %s9, %s7
  // Predicated region
  $region2: #{tpu_custom_call.1} parent=0 // pred_check
    _
  $region3: #{tpu_custom_call.1} parent=0 // pred_check_branch
    %12 = sbr.rel (0) target = $region5
  $region4: #{tpu_custom_call.1} parent=0 // pred_region
    _
  $region5: #{tpu_custom_call.1} parent=0 // pred_fallthru
    _
  // Predicated region
  $region6: #{tpu_custom_call.1} parent=0 // pred_check
    _
  $region7: #{tpu_custom_call.1} parent=0 // pred_check_branch
    %14 = sbr.rel (0) target = $region9
  $region8: #{tpu_custom_call.1} parent=0 // pred_region
    _
  $region9: #{tpu_custom_call.1} parent=0 // pred_fallthru
    _
  // Predicated region
  $region10: #{tpu_custom_call.1} parent=0 // pred_check
    _
  $region11: #{tpu_custom_call.1} parent=0 // pred_check_branch
    %16 = sbr.rel (0) target = $region13
  $region12: #{tpu_custom_call.1} parent=0 // pred_region
    _
  $region13: #{tpu_custom_call.1} parent=0 // pred_fallthru
    _
  // Predicated region
  $region14: #{tpu_custom_call.1} parent=0 // pred_check
    _
  $region15: #{tpu_custom_call.1} parent=0 // pred_check_branch
    %18 = sbr.rel (0) target = $region17
  $region16: #{tpu_custom_call.1} parent=0 // pred_region
    _
  $region17: #{tpu_custom_call.1} parent=0 // pred_fallthru
    _
  // Predicated region
  $region18: #{tpu_custom_call.1} parent=0 // pred_check
    _
  $region19: #{tpu_custom_call.1} parent=0 // pred_check_branch
    %20 = sbr.rel (0) target = $region21
  $region20: #{tpu_custom_call.1} parent=0 // pred_region
    _
  $region21: #{tpu_custom_call.1} parent=0 // pred_fallthru
    _
  // Predicated region
  $region22: #{tpu_custom_call.1} parent=0 // pred_check
    _
  $region23: #{tpu_custom_call.1} parent=0 // pred_check_branch
    %22 = sbr.rel (0) target = $region25
  $region24: #{tpu_custom_call.1} parent=0 // pred_region
    _
  $region25: #{tpu_custom_call.1} parent=0 // pred_fallthru
    _
  %v23 = vld [vmem:[%s0] sm:$0xff]
  %v24 = vld [vmem:[%s0 + $0x8] sm:$0xff]
  %v25 = vld [vmem:[%s0 + $0x10] sm:$0xff]
  %v26 = vld [vmem:[%s0 + $0x18] sm:$0xff]
  %v27 = vld [vmem:[%s0 + $0x20] sm:$0xff]
  %v28 = vld [vmem:[%s0 + $0x28] sm:$0xff]
  %v29 = vld [vmem:[%s0 + $0x30] sm:$0xff]
  %v30 = vld [vmem:[%s0 + $0x38] sm:$0xff]
  %v31 = vld [vmem:[%s4] sm:$0x1]
  %v32 = vld [vmem:[%s4 + $0x1] sm:$0x1]
  %v33 = vld [vmem:[%s4 + $0x2] sm:$0x1]
  %v34 = vld [vmem:[%s4 + $0x3] sm:$0x1]
  %v35 = vld [vmem:[%s4 + $0x4] sm:$0x1]
  %v36 = vld [vmem:[%s4 + $0x5] sm:$0x1]
  %v37 = vld [vmem:[%s1] sm:$0xff]
  %v38 = vld [vmem:[%s1 + $0x8] sm:$0xff]
  %v39 = vlaneseq
  %v40 = vshrl.u32 %v39, 7
  %v41 = vsub.s32 0, %v40
  %v42 = vrot.slane %v31, %v41
  %vm43 = vcmask 130048
  %v45 = vsel %vm43, %v23, 0
  %v48 = vsel %vm43, %v24, 0
  %v51 = vsel %vm43, %v25, 0
  %v54 = vsel %vm43, %v26, 0
  %v57 = vsel %vm43, %v27, 0
  %v60 = vsel %vm43, %v28, 0
  %v63 = vsel %vm43, %v29, 0
  %v66 = vsel %vm43, %v30, 0
  %68 = vmatprep.subr.mxu0 0.0
  %69 = vmatpush1.msra.mxu0 %v37
  %70 = vmatprep.subr.mxu0 0.0
  %71 = vmatpush1.msra.mxu0 %v38
  %72 = vmatprep.subr.mxu0 0.0
  %73 = vmatpush1.msra.mxu0 0.0
  %74 = vmatprep.subr.mxu0 0.0
  %75 = vmatpush1.msra.mxu0 0.0
  %76 = vmatprep.subr.mxu0 0.0
  %77 = vmatpush1.msra.mxu0 0.0
  %78 = vmatprep.subr.mxu0 0.0
  %79 = vmatpush1.msra.mxu0 0.0
  %80 = vmatprep.subr.mxu0 0.0
  %81 = vmatpush1.msra.mxu0 0.0
  %82 = vmatprep.subr.mxu0 0.0
  %83 = vmatpush1.msra.mxu0 0.0
  %84 = vmatprep.subr.mxu0 0.0
  %85 = vmatpush1.msra.mxu0 0.0
  %86 = vmatprep.subr.mxu0 0.0
  %87 = vmatpush1.msra.mxu0 0.0
  %88 = vmatprep.subr.mxu0 0.0
  %89 = vmatpush1.msra.mxu0 0.0
  %90 = vmatprep.subr.mxu0 0.0
  %91 = vmatpush1.msra.mxu0 0.0
  %92 = vmatprep.subr.mxu0 0.0
  %93 = vmatpush1.msra.mxu0 0.0
  %94 = vmatprep.subr.mxu0 0.0
  %95 = vmatpush1.msra.mxu0 0.0
  %96 = vmatprep.subr.mxu0 0.0
  %97 = vmatpush1.msra.mxu0 0.0
  %98 = vmatprep.subr.mxu0 0.0
  %99 = vmatpush1.msra.mxu0 0.0
  %100 = vmatprep.subr.mxu0 0.0
  %101 = vmatpush1.msra.mxu0 0.0
  %102 = vmatprep.subr.mxu0 0.0
  %103 = vmatpush1.msra.mxu0 0.0
  %104 = vmatprep.subr.mxu0 0.0
  %105 = vmatpush1.msra.mxu0 0.0
  %106 = vmatprep.subr.mxu0 0.0
  %107 = vmatpush1.msra.mxu0 0.0
  %108 = vmatprep.subr.mxu0 0.0
  %109 = vmatpush1.msra.mxu0 0.0
  %110 = vmatprep.subr.mxu0 0.0
  %111 = vmatpush1.msra.mxu0 0.0
  %112 = vmatprep.subr.mxu0 0.0
  %113 = vmatpush1.msra.mxu0 0.0
  %114 = vmatprep.subr.mxu0 0.0
  %115 = vmatpush1.msra.mxu0 0.0
  %116 = vmatprep.subr.mxu0 0.0
  %117 = vmatpush1.msra.mxu0 0.0
  %118 = vmatprep.subr.mxu0 0.0
  %119 = vmatpush1.msra.mxu0 0.0
  %120 = vmatprep.subr.mxu0 0.0
  %121 = vmatpush1.msra.mxu0 0.0
  %122 = vmatprep.subr.mxu0 0.0
  %123 = vmatpush1.msra.mxu0 0.0
  %124 = vmatprep.subr.mxu0 0.0
  %125 = vmatpush1.msra.mxu0 0.0
  %126 = vmatprep.subr.mxu0 0.0
  %127 = vmatpush1.msra.mxu0 0.0
  %128 = vmatprep.subr.mxu0 0.0
  %129 = vmatpush1.msra.mxu0 0.0
  %130 = vmatprep.subr.mxu0 0.0
  %131 = vmatpush1.msra.mxu0 0.0
  %132 = vmatprep.mubr.f32.mxu0 0.0
  %133 = vmatmul.mubr.f32.gmra.mrb[0].mxu0 %v45
  %v134 = vpop.f32.mrb[0].mxu0
  %v135 = vadd.f32 %v42, %v134
  %v136 = vpop.f32.mrb[0].mxu0
  %137 = vmatprep.mubr.f32.mxu0 0.0
  %138 = vmatmul.mubr.f32.gmra.mrb[0].mxu0 %v48
  %v139 = vpop.f32.mrb[0].mxu0
  %v140 = vadd.f32 %v42, %v139
  %v141 = vpop.f32.mrb[0].mxu0
  %142 = vmatprep.mubr.f32.mxu0 0.0
  %143 = vmatmul.mubr.f32.gmra.mrb[0].mxu0 %v51
  %v144 = vpop.f32.mrb[0].mxu0
  %v145 = vadd.f32 %v42, %v144
  %v146 = vpop.f32.mrb[0].mxu0
  %147 = vmatprep.mubr.f32.mxu0 0.0
  %148 = vmatmul.mubr.f32.gmra.mrb[0].mxu0 %v54
  %v149 = vpop.f32.mrb[0].mxu0
  %v150 = vadd.f32 %v42, %v149
  %v151 = vpop.f32.mrb[0].mxu0
  %152 = vmatprep.mubr.f32.mxu0 0.0
  %153 = vmatmul.mubr.f32.gmra.mrb[0].mxu0 %v57
  %v154 = vpop.f32.mrb[0].mxu0
  %v155 = vadd.f32 %v42, %v154
  %v156 = vpop.f32.mrb[0].mxu0
  %157 = vmatprep.mubr.f32.mxu0 0.0
  %158 = vmatmul.mubr.f32.gmra.mrb[0].mxu0 %v60
  %v159 = vpop.f32.mrb[0].mxu0
  %v160 = vadd.f32 %v42, %v159
  %v161 = vpop.f32.mrb[0].mxu0
  %162 = vmatprep.mubr.f32.mxu0 0.0
  %163 = vmatmul.mubr.f32.gmra.mrb[0].mxu0 %v63
  %v164 = vpop.f32.mrb[0].mxu0
  %v165 = vadd.f32 %v42, %v164
  %v166 = vpop.f32.mrb[0].mxu0
  %167 = vmatprep.mubr.f32.mxu0 0.0
  %168 = vmatmul.mubr.f32.gmra.mrb[0].mxu0 %v66
  %v169 = vpop.f32.mrb[0].mxu0
  %v170 = vadd.f32 %v42, %v169
  %v171 = vpop.f32.mrb[0].mxu0
  %172 = vdwg.mxu0
  %vm173 = vcmask 261120
  %v174 = vsel %vm173, %v135, 0.0
  %175 = vadd.xlane.f32.xlu0 %v174
  %v176 = vpop.xlane.xlu0 %175
  %v177 = vsel %vm173, %v140, 0.0
  %178 = vadd.xlane.f32.xlu0 %v177
  %v179 = vpop.xlane.xlu0 %178
  %v180 = vsel %vm173, %v145, 0.0
  %181 = vadd.xlane.f32.xlu0 %v180
  %v182 = vpop.xlane.xlu0 %181
  %v183 = vsel %vm173, %v150, 0.0
  %184 = vadd.xlane.f32.xlu0 %v183
  %v185 = vpop.xlane.xlu0 %184
  %v186 = vsel %vm173, %v155, 0.0
  %187 = vadd.xlane.f32.xlu0 %v186
  %v188 = vpop.xlane.xlu0 %187
  %v189 = vsel %vm173, %v160, 0.0
  %190 = vadd.xlane.f32.xlu0 %v189
  %v191 = vpop.xlane.xlu0 %190
  %v192 = vsel %vm173, %v165, 0.0
  %193 = vadd.xlane.f32.xlu0 %v192
  %v194 = vpop.xlane.xlu0 %193
  %v195 = vsel %vm173, %v170, 0.0
  %196 = vadd.xlane.f32.xlu0 %v195
  %v197 = vpop.xlane.xlu0 %196
  %v198 = vrcp.pop 32.0
  %v199 = vmul.f32 %v176, %v198
  %v200 = vmul.f32 %v179, %v198
  %v201 = vmul.f32 %v182, %v198
  %v202 = vmul.f32 %v185, %v198
  %v203 = vmul.f32 %v188, %v198
  %v204 = vmul.f32 %v191, %v198
  %v205 = vmul.f32 %v194, %v198
  %v206 = vmul.f32 %v197, %v198
  %v207 = vsub.f32 %v135, %v199
  %v208 = vsub.f32 %v140, %v200
  %v209 = vsub.f32 %v145, %v201
  %v210 = vsub.f32 %v150, %v202
  %v211 = vsub.f32 %v155, %v203
  %v212 = vsub.f32 %v160, %v204
  %v213 = vsub.f32 %v165, %v205
  %v214 = vsub.f32 %v170, %v206
  %v215 = vmul.f32 %v207, %v207
  %v216 = vmul.f32 %v208, %v208
  %v217 = vmul.f32 %v209, %v209
  %v218 = vmul.f32 %v210, %v210
  %v219 = vmul.f32 %v211, %v211
  %v220 = vmul.f32 %v212, %v212
  %v221 = vmul.f32 %v213, %v213
  %v222 = vmul.f32 %v214, %v214
  %v223 = vsel %vm173, %v215, 0.0
  %224 = vadd.xlane.f32.xlu0 %v223
  %v225 = vpop.xlane.xlu0 %224
  %v226 = vsel %vm173, %v216, 0.0
  %227 = vadd.xlane.f32.xlu0 %v226
  %v228 = vpop.xlane.xlu0 %227
  %v229 = vsel %vm173, %v217, 0.0
  %230 = vadd.xlane.f32.xlu0 %v229
  %v231 = vpop.xlane.xlu0 %230
  %v232 = vsel %vm173, %v218, 0.0
  %233 = vadd.xlane.f32.xlu0 %v232
  %v234 = vpop.xlane.xlu0 %233
  %v235 = vsel %vm173, %v219, 0.0
  %236 = vadd.xlane.f32.xlu0 %v235
  %v237 = vpop.xlane.xlu0 %236
  %v238 = vsel %vm173, %v220, 0.0
  %239 = vadd.xlane.f32.xlu0 %v238
  %v240 = vpop.xlane.xlu0 %239
  %v241 = vsel %vm173, %v221, 0.0
  %242 = vadd.xlane.f32.xlu0 %v241
  %v243 = vpop.xlane.xlu0 %242
  %v244 = vsel %vm173, %v222, 0.0
  %245 = vadd.xlane.f32.xlu0 %v244
  %v246 = vpop.xlane.xlu0 %245
  %v247 = vmul.f32 %v225, %v198
  %v248 = vmul.f32 %v228, %v198
  %v249 = vmul.f32 %v231, %v198
  %v250 = vmul.f32 %v234, %v198
  %v251 = vmul.f32 %v237, %v198
  %v252 = vmul.f32 %v240, %v198
  %v253 = vmul.f32 %v243, %v198
  %v254 = vmul.f32 %v246, %v198
  %v255 = vadd.f32 %v247, 1e-05
  %v256 = vadd.f32 %v248, 1e-05
  %v257 = vadd.f32 %v249, 1e-05
  %v258 = vadd.f32 %v250, 1e-05
  %v259 = vadd.f32 %v251, 1e-05
  %v260 = vadd.f32 %v252, 1e-05
  %v261 = vadd.f32 %v253, 1e-05
  %v262 = vadd.f32 %v254, 1e-05
  %v263 = vrsqrt.pop %v255
  %v264 = vrsqrt.pop %v256
  %v265 = vrsqrt.pop %v257
  %v266 = vrsqrt.pop %v258
  %v267 = vrsqrt.pop %v259
  %v268 = vrsqrt.pop %v260
  %v269 = vrsqrt.pop %v261
  %v270 = vrsqrt.pop %v262
  %v271 = vmul.f32 %v207, %v263
  %v272 = vmul.f32 %v208, %v264
  %v273 = vmul.f32 %v209, %v265
  %v274 = vmul.f32 %v210, %v266
  %v275 = vmul.f32 %v211, %v267
  %v276 = vmul.f32 %v212, %v268
  %v277 = vmul.f32 %v213, %v269
  %v278 = vmul.f32 %v214, %v270
  %v279 = vlaneseq
  %v280 = vshrl.u32 %v279, 7
  %v281 = vsub.s32 0, %v280
  %v282 = vrot.slane %v32, %v281
  %v283 = vmul.f32 %v271, %v282
  %v284 = vmul.f32 %v272, %v282
  %v285 = vmul.f32 %v273, %v282
  %v286 = vmul.f32 %v274, %v282
  %v287 = vmul.f32 %v275, %v282
  %v288 = vmul.f32 %v276, %v282
  %v289 = vmul.f32 %v277, %v282
  %v290 = vmul.f32 %v278, %v282
  %v291 = vlaneseq
  %v292 = vshrl.u32 %v291, 7
  %v293 = vsub.s32 0, %v292
  %v294 = vrot.slane %v33, %v293
  %v295 = vadd.f32 %v283, %v294
  %v296 = vadd.f32 %v284, %v294
  %v297 = vadd.f32 %v285, %v294
  %v298 = vadd.f32 %v286, %v294
  %v299 = vadd.f32 %v287, %v294
  %v300 = vadd.f32 %v288, %v294
  %v301 = vadd.f32 %v289, %v294
  %v302 = vadd.f32 %v290, %v294
  %vm303 = vcmp.gt.f32.partialorder %v295, 0.0
  %vm304 = vcmp.gt.f32.partialorder %v296, 0.0
  %vm305 = vcmp.gt.f32.partialorder %v297, 0.0
  %vm306 = vcmp.gt.f32.partialorder %v298, 0.0
  %vm307 = vcmp.gt.f32.partialorder %v299, 0.0
  %vm308 = vcmp.gt.f32.partialorder %v300, 0.0
  %vm309 = vcmp.gt.f32.partialorder %v301, 0.0
  %vm310 = vcmp.gt.f32.partialorder %v302, 0.0
  %v311 = vmul.f32 %v295, 0.01
  %v312 = vmul.f32 %v296, 0.01
  %v313 = vmul.f32 %v297, 0.01
  %v314 = vmul.f32 %v298, 0.01
  %v315 = vmul.f32 %v299, 0.01
  %v316 = vmul.f32 %v300, 0.01
  %v317 = vmul.f32 %v301, 0.01
  %v318 = vmul.f32 %v302, 0.01
  %v319 = vsel %vm303, %v295, %v311
  %v320 = vsel %vm304, %v296, %v312
  %v321 = vsel %vm305, %v297, %v313
  %v322 = vsel %vm306, %v298, %v314
  %v323 = vsel %vm307, %v299, %v315
  %v324 = vsel %vm308, %v300, %v316
  %v325 = vsel %vm309, %v301, %v317
  %v326 = vsel %vm310, %v302, %v318
  %v327 = vld [vmem:[%s2] sm:$0xff]
  %v328 = vld [vmem:[%s2 + $0x8] sm:$0xff]
  %v329 = vld [vmem:[%s2 + $0x10] sm:$0xff]
  %v330 = vld [vmem:[%s2 + $0x18] sm:$0xff]
  %v331 = vlaneseq
  %v332 = vshrl.u32 %v331, 7
  %v333 = vsub.s32 0, %v332
  %v334 = vrot.slane %v34, %v333
  %v336 = vsel %vm173, %v319, 0
  %v339 = vsel %vm173, %v320, 0
  %v342 = vsel %vm173, %v321, 0
  %v345 = vsel %vm173, %v322, 0
  %v348 = vsel %vm173, %v323, 0
  %v351 = vsel %vm173, %v324, 0
  %v354 = vsel %vm173, %v325, 0
  %v357 = vsel %vm173, %v326, 0
  %359 = vmatprep.subr.mxu0 0.0
  %360 = vmatpush1.msra.mxu0 %v327
  %361 = vmatprep.subr.mxu0 0.0
  %362 = vmatpush1.msra.mxu0 %v328
  %363 = vmatprep.subr.mxu0 0.0
  %364 = vmatpush1.msra.mxu0 %v329
  %365 = vmatprep.subr.mxu0 0.0
  %366 = vmatpush1.msra.mxu0 %v330
  %367 = vmatprep.subr.mxu0 0.0
  %368 = vmatpush1.msra.mxu0 0.0
  %369 = vmatprep.subr.mxu0 0.0
  %370 = vmatpush1.msra.mxu0 0.0
  %371 = vmatprep.subr.mxu0 0.0
  %372 = vmatpush1.msra.mxu0 0.0
  %373 = vmatprep.subr.mxu0 0.0
  %374 = vmatpush1.msra.mxu0 0.0
  %375 = vmatprep.subr.mxu0 0.0
  %376 = vmatpush1.msra.mxu0 0.0
  %377 = vmatprep.subr.mxu0 0.0
  %378 = vmatpush1.msra.mxu0 0.0
  %379 = vmatprep.subr.mxu0 0.0
  %380 = vmatpush1.msra.mxu0 0.0
  %381 = vmatprep.subr.mxu0 0.0
  %382 = vmatpush1.msra.mxu0 0.0
  %383 = vmatprep.subr.mxu0 0.0
  %384 = vmatpush1.msra.mxu0 0.0
  %385 = vmatprep.subr.mxu0 0.0
  %386 = vmatpush1.msra.mxu0 0.0
  %387 = vmatprep.subr.mxu0 0.0
  %388 = vmatpush1.msra.mxu0 0.0
  %389 = vmatprep.subr.mxu0 0.0
  %390 = vmatpush1.msra.mxu0 0.0
  %391 = vmatprep.subr.mxu0 0.0
  %392 = vmatpush1.msra.mxu0 0.0
  %393 = vmatprep.subr.mxu0 0.0
  %394 = vmatpush1.msra.mxu0 0.0
  %395 = vmatprep.subr.mxu0 0.0
  %396 = vmatpush1.msra.mxu0 0.0
  %397 = vmatprep.subr.mxu0 0.0
  %398 = vmatpush1.msra.mxu0 0.0
  %399 = vmatprep.subr.mxu0 0.0
  %400 = vmatpush1.msra.mxu0 0.0
  %401 = vmatprep.subr.mxu0 0.0
  %402 = vmatpush1.msra.mxu0 0.0
  %403 = vmatprep.subr.mxu0 0.0
  %404 = vmatpush1.msra.mxu0 0.0
  %405 = vmatprep.subr.mxu0 0.0
  %406 = vmatpush1.msra.mxu0 0.0
  %407 = vmatprep.subr.mxu0 0.0
  %408 = vmatpush1.msra.mxu0 0.0
  %409 = vmatprep.subr.mxu0 0.0
  %410 = vmatpush1.msra.mxu0 0.0
  %411 = vmatprep.subr.mxu0 0.0
  %412 = vmatpush1.msra.mxu0 0.0
  %413 = vmatprep.subr.mxu0 0.0
  %414 = vmatpush1.msra.mxu0 0.0
  %415 = vmatprep.subr.mxu0 0.0
  %416 = vmatpush1.msra.mxu0 0.0
  %417 = vmatprep.subr.mxu0 0.0
  %418 = vmatpush1.msra.mxu0 0.0
  %419 = vmatprep.subr.mxu0 0.0
  %420 = vmatpush1.msra.mxu0 0.0
  %421 = vmatprep.subr.mxu0 0.0
  %422 = vmatpush1.msra.mxu0 0.0
  %423 = vmatprep.mubr.f32.mxu0 0.0
  %424 = vmatmul.mubr.f32.gmra.mrb[0].mxu0 %v336
  %v425 = vpop.f32.mrb[0].mxu0
  %v426 = vadd.f32 %v334, %v425
  %v427 = vpop.f32.mrb[0].mxu0
  %428 = vmatprep.mubr.f32.mxu0 0.0
  %429 = vmatmul.mubr.f32.gmra.mrb[0].mxu0 %v339
  %v430 = vpop.f32.mrb[0].mxu0
  %v431 = vadd.f32 %v334, %v430
  %v432 = vpop.f32.mrb[0].mxu0
  %433 = vmatprep.mubr.f32.mxu0 0.0
  %434 = vmatmul.mubr.f32.gmra.mrb[0].mxu0 %v342
  %v435 = vpop.f32.mrb[0].mxu0
  %v436 = vadd.f32 %v334, %v435
  %v437 = vpop.f32.mrb[0].mxu0
  %438 = vmatprep.mubr.f32.mxu0 0.0
  %439 = vmatmul.mubr.f32.gmra.mrb[0].mxu0 %v345
  %v440 = vpop.f32.mrb[0].mxu0
  %v441 = vadd.f32 %v334, %v440
  %v442 = vpop.f32.mrb[0].mxu0
  %443 = vmatprep.mubr.f32.mxu0 0.0
  %444 = vmatmul.mubr.f32.gmra.mrb[0].mxu0 %v348
  %v445 = vpop.f32.mrb[0].mxu0
  %v446 = vadd.f32 %v334, %v445
  %v447 = vpop.f32.mrb[0].mxu0
  %448 = vmatprep.mubr.f32.mxu0 0.0
  %449 = vmatmul.mubr.f32.gmra.mrb[0].mxu0 %v351
  %v450 = vpop.f32.mrb[0].mxu0
  %v451 = vadd.f32 %v334, %v450
  %v452 = vpop.f32.mrb[0].mxu0
  %453 = vmatprep.mubr.f32.mxu0 0.0
  %454 = vmatmul.mubr.f32.gmra.mrb[0].mxu0 %v354
  %v455 = vpop.f32.mrb[0].mxu0
  %v456 = vadd.f32 %v334, %v455
  %v457 = vpop.f32.mrb[0].mxu0
  %458 = vmatprep.mubr.f32.mxu0 0.0
  %459 = vmatmul.mubr.f32.gmra.mrb[0].mxu0 %v357
  %v460 = vpop.f32.mrb[0].mxu0
  %v461 = vadd.f32 %v334, %v460
  %v462 = vpop.f32.mrb[0].mxu0
  %463 = vdwg.mxu0
  %v464 = vsel %vm173, %v426, 0.0
  %465 = vadd.xlane.f32.xlu0 %v464
  %v466 = vpop.xlane.xlu0 %465
  %v467 = vsel %vm173, %v431, 0.0
  %468 = vadd.xlane.f32.xlu0 %v467
  %v469 = vpop.xlane.xlu0 %468
  %v470 = vsel %vm173, %v436, 0.0
  %471 = vadd.xlane.f32.xlu0 %v470
  %v472 = vpop.xlane.xlu0 %471
  %v473 = vsel %vm173, %v441, 0.0
  %474 = vadd.xlane.f32.xlu0 %v473
  %v475 = vpop.xlane.xlu0 %474
  %v476 = vsel %vm173, %v446, 0.0
  %477 = vadd.xlane.f32.xlu0 %v476
  %v478 = vpop.xlane.xlu0 %477
  %v479 = vsel %vm173, %v451, 0.0
  %480 = vadd.xlane.f32.xlu0 %v479
  %v481 = vpop.xlane.xlu0 %480
  %v482 = vsel %vm173, %v456, 0.0
  %483 = vadd.xlane.f32.xlu0 %v482
  %v484 = vpop.xlane.xlu0 %483
  %v485 = vsel %vm173, %v461, 0.0
  %486 = vadd.xlane.f32.xlu0 %v485
  %v487 = vpop.xlane.xlu0 %486
  %v488 = vmul.f32 %v466, %v198
  %v489 = vmul.f32 %v469, %v198
  %v490 = vmul.f32 %v472, %v198
  %v491 = vmul.f32 %v475, %v198
  %v492 = vmul.f32 %v478, %v198
  %v493 = vmul.f32 %v481, %v198
  %v494 = vmul.f32 %v484, %v198
  %v495 = vmul.f32 %v487, %v198
  %v496 = vsub.f32 %v426, %v488
  %v497 = vsub.f32 %v431, %v489
  %v498 = vsub.f32 %v436, %v490
  %v499 = vsub.f32 %v441, %v491
  %v500 = vsub.f32 %v446, %v492
  %v501 = vsub.f32 %v451, %v493
  %v502 = vsub.f32 %v456, %v494
  %v503 = vsub.f32 %v461, %v495
  %v504 = vmul.f32 %v496, %v496
  %v505 = vmul.f32 %v497, %v497
  %v506 = vmul.f32 %v498, %v498
  %v507 = vmul.f32 %v499, %v499
  %v508 = vmul.f32 %v500, %v500
  %v509 = vmul.f32 %v501, %v501
  %v510 = vmul.f32 %v502, %v502
  %v511 = vmul.f32 %v503, %v503
  %v512 = vsel %vm173, %v504, 0.0
  %513 = vadd.xlane.f32.xlu0 %v512
  %v514 = vpop.xlane.xlu0 %513
  %v515 = vsel %vm173, %v505, 0.0
  %516 = vadd.xlane.f32.xlu0 %v515
  %v517 = vpop.xlane.xlu0 %516
  %v518 = vsel %vm173, %v506, 0.0
  %519 = vadd.xlane.f32.xlu0 %v518
  %v520 = vpop.xlane.xlu0 %519
  %v521 = vsel %vm173, %v507, 0.0
  %522 = vadd.xlane.f32.xlu0 %v521
  %v523 = vpop.xlane.xlu0 %522
  %v524 = vsel %vm173, %v508, 0.0
  %525 = vadd.xlane.f32.xlu0 %v524
  %v526 = vpop.xlane.xlu0 %525
  %v527 = vsel %vm173, %v509, 0.0
  %528 = vadd.xlane.f32.xlu0 %v527
  %v529 = vpop.xlane.xlu0 %528
  %v530 = vsel %vm173, %v510, 0.0
  %531 = vadd.xlane.f32.xlu0 %v530
  %v532 = vpop.xlane.xlu0 %531
  %v533 = vsel %vm173, %v511, 0.0
  %534 = vadd.xlane.f32.xlu0 %v533
  %v535 = vpop.xlane.xlu0 %534
  %v536 = vmul.f32 %v514, %v198
  %v537 = vmul.f32 %v517, %v198
  %v538 = vmul.f32 %v520, %v198
  %v539 = vmul.f32 %v523, %v198
  %v540 = vmul.f32 %v526, %v198
  %v541 = vmul.f32 %v529, %v198
  %v542 = vmul.f32 %v532, %v198
  %v543 = vmul.f32 %v535, %v198
  %v544 = vadd.f32 %v536, 1e-05
  %v545 = vadd.f32 %v537, 1e-05
  %v546 = vadd.f32 %v538, 1e-05
  %v547 = vadd.f32 %v539, 1e-05
  %v548 = vadd.f32 %v540, 1e-05
  %v549 = vadd.f32 %v541, 1e-05
  %v550 = vadd.f32 %v542, 1e-05
  %v551 = vadd.f32 %v543, 1e-05
  %v552 = vrsqrt.pop %v544
  %v553 = vrsqrt.pop %v545
  %v554 = vrsqrt.pop %v546
  %v555 = vrsqrt.pop %v547
  %v556 = vrsqrt.pop %v548
  %v557 = vrsqrt.pop %v549
  %v558 = vrsqrt.pop %v550
  %v559 = vrsqrt.pop %v551
  %v560 = vmul.f32 %v496, %v552
  %v561 = vmul.f32 %v497, %v553
  %v562 = vmul.f32 %v498, %v554
  %v563 = vmul.f32 %v499, %v555
  %v564 = vmul.f32 %v500, %v556
  %v565 = vmul.f32 %v501, %v557
  %v566 = vmul.f32 %v502, %v558
  %v567 = vmul.f32 %v503, %v559
  %v568 = vlaneseq
  %v569 = vshrl.u32 %v568, 7
  %v570 = vsub.s32 0, %v569
  %v571 = vrot.slane %v35, %v570
  %v572 = vmul.f32 %v560, %v571
  %v573 = vmul.f32 %v561, %v571
  %v574 = vmul.f32 %v562, %v571
  %v575 = vmul.f32 %v563, %v571
  %v576 = vmul.f32 %v564, %v571
  %v577 = vmul.f32 %v565, %v571
  %v578 = vmul.f32 %v566, %v571
  %v579 = vmul.f32 %v567, %v571
  %v580 = vlaneseq
  %v581 = vshrl.u32 %v580, 7
  %v582 = vsub.s32 0, %v581
  %v583 = vrot.slane %v36, %v582
  %v584 = vadd.f32 %v572, %v583
  %v585 = vadd.f32 %v573, %v583
  %v586 = vadd.f32 %v574, %v583
  %v587 = vadd.f32 %v575, %v583
  %v588 = vadd.f32 %v576, %v583
  %v589 = vadd.f32 %v577, %v583
  %v590 = vadd.f32 %v578, %v583
  %v591 = vadd.f32 %v579, %v583
  %vm592 = vcmp.gt.f32.partialorder %v584, 0.0
  %vm593 = vcmp.gt.f32.partialorder %v585, 0.0
  %vm594 = vcmp.gt.f32.partialorder %v586, 0.0
  %vm595 = vcmp.gt.f32.partialorder %v587, 0.0
  %vm596 = vcmp.gt.f32.partialorder %v588, 0.0
  %vm597 = vcmp.gt.f32.partialorder %v589, 0.0
  %vm598 = vcmp.gt.f32.partialorder %v590, 0.0
  %vm599 = vcmp.gt.f32.partialorder %v591, 0.0
  %v600 = vmul.f32 %v584, 0.01
  %v601 = vmul.f32 %v585, 0.01
  %v602 = vmul.f32 %v586, 0.01
  %v603 = vmul.f32 %v587, 0.01
  %v604 = vmul.f32 %v588, 0.01
  %v605 = vmul.f32 %v589, 0.01
  %v606 = vmul.f32 %v590, 0.01
  %v607 = vmul.f32 %v591, 0.01
  %v608 = vsel %vm592, %v584, %v600
  %v609 = vsel %vm593, %v585, %v601
  %v610 = vsel %vm594, %v586, %v602
  %v611 = vsel %vm595, %v587, %v603
  %v612 = vsel %vm596, %v588, %v604
  %v613 = vsel %vm597, %v589, %v605
  %v614 = vsel %vm598, %v590, %v606
  %v615 = vsel %vm599, %v591, %v607
  %v616 = vld [vmem:[%s3] sm:$0xff]
  %v617 = vld [vmem:[%s3 + $0x8] sm:$0xff]
  %v618 = vld [vmem:[%s3 + $0x10] sm:$0xff]
  %v619 = vld [vmem:[%s3 + $0x18] sm:$0xff]
  %v620 = vld [vmem:[%s5] sm:$0x1]
  %v622 = vlaneseq
  %v623 = vshrl.u32 %v622, 7
  %v624 = vsub.s32 0, %v623
  %v625 = vrot.slane %v620, %v624
  %v628 = vsel %vm173, %v608, 0
  %v631 = vsel %vm173, %v609, 0
  %v634 = vsel %vm173, %v610, 0
  %v637 = vsel %vm173, %v611, 0
  %v640 = vsel %vm173, %v612, 0
  %v643 = vsel %vm173, %v613, 0
  %v646 = vsel %vm173, %v614, 0
  %v649 = vsel %vm173, %v615, 0
  %651 = vmatprep.subr.mxu0 0.0
  %652 = vmatpush1.msra.mxu0 %v616
  %653 = vmatprep.subr.mxu0 0.0
  %654 = vmatpush1.msra.mxu0 %v617
  %655 = vmatprep.subr.mxu0 0.0
  %656 = vmatpush1.msra.mxu0 %v618
  %657 = vmatprep.subr.mxu0 0.0
  %658 = vmatpush1.msra.mxu0 %v619
  %659 = vmatprep.subr.mxu0 0.0
  %660 = vmatpush1.msra.mxu0 0.0
  %661 = vmatprep.subr.mxu0 0.0
  %662 = vmatpush1.msra.mxu0 0.0
  %663 = vmatprep.subr.mxu0 0.0
  %664 = vmatpush1.msra.mxu0 0.0
  %665 = vmatprep.subr.mxu0 0.0
  %666 = vmatpush1.msra.mxu0 0.0
  %667 = vmatprep.subr.mxu0 0.0
  %668 = vmatpush1.msra.mxu0 0.0
  %669 = vmatprep.subr.mxu0 0.0
  %670 = vmatpush1.msra.mxu0 0.0
  %671 = vmatprep.subr.mxu0 0.0
  %672 = vmatpush1.msra.mxu0 0.0
  %673 = vmatprep.subr.mxu0 0.0
  %674 = vmatpush1.msra.mxu0 0.0
  %675 = vmatprep.subr.mxu0 0.0
  %676 = vmatpush1.msra.mxu0 0.0
  %677 = vmatprep.subr.mxu0 0.0
  %678 = vmatpush1.msra.mxu0 0.0
  %679 = vmatprep.subr.mxu0 0.0
  %680 = vmatpush1.msra.mxu0 0.0
  %681 = vmatprep.subr.mxu0 0.0
  %682 = vmatpush1.msra.mxu0 0.0
  %683 = vmatprep.subr.mxu0 0.0
  %684 = vmatpush1.msra.mxu0 0.0
  %685 = vmatprep.subr.mxu0 0.0
  %686 = vmatpush1.msra.mxu0 0.0
  %687 = vmatprep.subr.mxu0 0.0
  %688 = vmatpush1.msra.mxu0 0.0
  %689 = vmatprep.subr.mxu0 0.0
  %690 = vmatpush1.msra.mxu0 0.0
  %691 = vmatprep.subr.mxu0 0.0
  %692 = vmatpush1.msra.mxu0 0.0
  %693 = vmatprep.subr.mxu0 0.0
  %694 = vmatpush1.msra.mxu0 0.0
  %695 = vmatprep.subr.mxu0 0.0
  %696 = vmatpush1.msra.mxu0 0.0
  %697 = vmatprep.subr.mxu0 0.0
  %698 = vmatpush1.msra.mxu0 0.0
  %699 = vmatprep.subr.mxu0 0.0
  %700 = vmatpush1.msra.mxu0 0.0
  %701 = vmatprep.subr.mxu0 0.0
  %702 = vmatpush1.msra.mxu0 0.0
  %703 = vmatprep.subr.mxu0 0.0
  %704 = vmatpush1.msra.mxu0 0.0
  %705 = vmatprep.subr.mxu0 0.0
  %706 = vmatpush1.msra.mxu0 0.0
  %707 = vmatprep.subr.mxu0 0.0
  %708 = vmatpush1.msra.mxu0 0.0
  %709 = vmatprep.subr.mxu0 0.0
  %710 = vmatpush1.msra.mxu0 0.0
  %711 = vmatprep.subr.mxu0 0.0
  %712 = vmatpush1.msra.mxu0 0.0
  %713 = vmatprep.subr.mxu0 0.0
  %714 = vmatpush1.msra.mxu0 0.0
  %715 = vmatprep.mubr.f32.mxu0 0.0
  %716 = vmatmul.mubr.f32.gmra.mrb[0].mxu0 %v628
  %v717 = vpop.f32.mrb[0].mxu0
  %v718 = vadd.f32 %v625, %v717
  %v719 = vpop.f32.mrb[0].mxu0
  %720 = vmatprep.mubr.f32.mxu0 0.0
  %721 = vmatmul.mubr.f32.gmra.mrb[0].mxu0 %v631
  %v722 = vpop.f32.mrb[0].mxu0
  %v723 = vadd.f32 %v625, %v722
  %v724 = vpop.f32.mrb[0].mxu0
  %725 = vmatprep.mubr.f32.mxu0 0.0
  %726 = vmatmul.mubr.f32.gmra.mrb[0].mxu0 %v634
  %v727 = vpop.f32.mrb[0].mxu0
  %v728 = vadd.f32 %v625, %v727
  %v729 = vpop.f32.mrb[0].mxu0
  %730 = vmatprep.mubr.f32.mxu0 0.0
  %731 = vmatmul.mubr.f32.gmra.mrb[0].mxu0 %v637
  %v732 = vpop.f32.mrb[0].mxu0
  %v733 = vadd.f32 %v625, %v732
  %v734 = vpop.f32.mrb[0].mxu0
  %735 = vmatprep.mubr.f32.mxu0 0.0
  %736 = vmatmul.mubr.f32.gmra.mrb[0].mxu0 %v640
  %v737 = vpop.f32.mrb[0].mxu0
  %v738 = vadd.f32 %v625, %v737
  %v739 = vpop.f32.mrb[0].mxu0
  %740 = vmatprep.mubr.f32.mxu0 0.0
  %741 = vmatmul.mubr.f32.gmra.mrb[0].mxu0 %v643
  %v742 = vpop.f32.mrb[0].mxu0
  %v743 = vadd.f32 %v625, %v742
  %v744 = vpop.f32.mrb[0].mxu0
  %745 = vmatprep.mubr.f32.mxu0 0.0
  %746 = vmatmul.mubr.f32.gmra.mrb[0].mxu0 %v646
  %v747 = vpop.f32.mrb[0].mxu0
  %v748 = vadd.f32 %v625, %v747
  %v749 = vpop.f32.mrb[0].mxu0
  %750 = vmatprep.mubr.f32.mxu0 0.0
  %751 = vmatmul.mubr.f32.gmra.mrb[0].mxu0 %v649
  %v752 = vpop.f32.mrb[0].mxu0
  %v753 = vadd.f32 %v625, %v752
  %v754 = vpop.f32.mrb[0].mxu0
  %755 = vdwg.mxu0
  %756 = vst.msk [vmem:[%s6] sm:$0xff] %vm43, %v718
  %757 = vst.msk [vmem:[%s6 + $0x8] sm:$0xff] %vm43, %v723
  %758 = vst.msk [vmem:[%s6 + $0x10] sm:$0xff] %vm43, %v728
  %759 = vst.msk [vmem:[%s6 + $0x18] sm:$0xff] %vm43, %v733
  %760 = vst.msk [vmem:[%s6 + $0x20] sm:$0xff] %vm43, %v738
  %761 = vst.msk [vmem:[%s6 + $0x28] sm:$0xff] %vm43, %v743
  %762 = vst.msk [vmem:[%s6 + $0x30] sm:$0xff] %vm43, %v748
  %763 = vst.msk [vmem:[%s6 + $0x38] sm:$0xff] %vm43, %v753
  // Predicated region
  $region26: #{tpu_custom_call.1} parent=0 // pred_check
    _
  $region27: #{tpu_custom_call.1} parent=0 // pred_check_branch
    %765 = sbr.rel (0) target = $region29
  $region28: #{tpu_custom_call.1} parent=0 // pred_region
    _
  $region29: #{tpu_custom_call.1} parent=0 // pred_fallthru
    _
  // Predicated region
  $region30: #{tpu_custom_call.1} parent=0 // pred_check
    _
  $region31: #{tpu_custom_call.1} parent=0 // pred_check_branch
    %767 = sbr.rel (0) target = $region33
  $region32: #{tpu_custom_call.1} parent=0 // pred_region
    _
  $region33: #{tpu_custom_call.1} parent=0 // pred_fallthru
    _

</llo_original>
